<compile_context>
chip_gen: v5e
topology: v5e:2x2
jax: 0.10.0
libtpu: 0.0.40
codegen_flags: <defaults>
</compile_context>

<pallas_src>
import jax
import jax.numpy as jnp
from jax.experimental import pallas as pl
from jax.experimental.pallas import tpu as pltpu

# ---- SpecAug "config" (deterministic, synthetic) ---------------------------
FREQ_MASK_PARAM = 30   # specaug_conf['frequency_mask']['F']
NUM_FREQ_MASKS = 2     # specaug_conf['frequency_mask']['num_mask']
TIME_MASK_PARAM = 40   # specaug_conf['time_mask']['T']
NUM_TIME_MASKS = 2     # specaug_conf['time_mask']['num_mask']

# ~2 MiB per block: 2 buffers x (in + out) x 2 MiB ~= 8 MiB pipeline footprint, safely
# under v5e's 16 MiB default scoped VMEM and far under v7x's 64 MiB physical VMEM, while
# already on the measured HBM-roofline plateau for streaming elementwise ops.
_BLOCK_TARGET_BYTES = 2 << 20


def specaug_kernel(keep_ref, x_ref, o_ref):
    """Pure bandwidth kernel: out = x * keep (keep is 0.0 / 1.0, batch-shared).

    keep_ref: VMEM (1,  ts, 128)  -- batch-shared, constant along the batch grid axis
    x_ref   : VMEM (bt, ts, 128)
    o_ref   : VMEM (bt, ts, 128)
    """
    o_ref[...] = x_ref[...] * keep_ref[...]


def _build_keep_mask(T, F, freq_masks, time_masks, dtype):
    """Batch-shared keep mask, built from two small 1-D iotas (tiny XLA op)."""
    t_idx = jnp.arange(T, dtype=jnp.int32)[:, None]   # (T, 1)
    f_idx = jnp.arange(F, dtype=jnp.int32)[None, :]   # (1, F)
    keep_t = jnp.ones((T, 1), dtype=jnp.bool_)
    for m in range(time_masks.shape[0]):
        keep_t &= ~((t_idx >= time_masks[m, 0]) & (t_idx < time_masks[m, 1]))
    keep_f = jnp.ones((1, F), dtype=jnp.bool_)
    for m in range(freq_masks.shape[0]):
        keep_f &= ~((f_idx >= freq_masks[m, 0]) & (f_idx < freq_masks[m, 1]))
    return (keep_t & keep_f).astype(dtype)            # (T, F)


def _sublane_tile(dtype):
    """Native sublane packing: 8 for 32-bit, 16 for bf16/fp16, 32 for int8/fp8."""
    itemsize = jnp.dtype(dtype).itemsize
    return max(8, 8 * (4 // max(1, itemsize)))


def _num_tensorcores_per_chip():
    """2 on v7x-style 2-TC chips, 1 on v5e/v6e.  Conservative default on unknowns."""
    try:
        kind = jax.devices()[0].device_kind.lower()
    except Exception:
        return 1
    return 2 if ("v7" in kind or "7x" in kind) else 1


def specaug_pallas(feature_pwr, freq_masks, time_masks,
                   block_target_bytes=_BLOCK_TARGET_BYTES):
    B, T, F = feature_pwr.shape
    dtype = feature_pwr.dtype
    itemsize = jnp.dtype(dtype).itemsize
    sub_tile = _sublane_tile(dtype)

    keep = _build_keep_mask(T, F, freq_masks, time_masks, dtype)  # (T, F)

    # Lane-dense presentation: flatten each batch row to T*F and pad up to a multiple of
    # (sub_tile * 128) so the last dim is exactly 128 lanes and the sublane dim is a
    # multiple of the dtype's packing.  keep is padded with zeros -> padded tail is 0 and
    # gets sliced off below.
    TF = T * F
    L = 128
    chunk = sub_tile * L
    TF_pad = ((TF + chunk - 1) // chunk) * chunk
    S = TF_pad // L
    pad = TF_pad - TF

    x = feature_pwr.reshape(B, TF)
    keep = keep.reshape(1, TF)
    if pad:
        x = jnp.pad(x, ((0, 0), (0, pad)))
        keep = jnp.pad(keep, ((0, 0), (0, pad)))
    x = x.reshape(B, S, L)
    keep = keep.reshape(1, S, L)

    # ---- Tile-size heuristic (all static Python arithmetic) ----
    row_bytes = S * L * itemsize                 # one padded batch row
    bt = int(max(1, min(B, block_target_bytes // max(1, row_bytes))))
    ts = S
    if row_bytes > block_target_bytes:
        # A single batch row exceeds the target: split it along S into sublane-aligned,
        # ~target-sized chunks (also protects v7x's smaller per-TC VMEM).
        ts = int(max(sub_tile,
                     (block_target_bytes // (L * itemsize)) // sub_tile * sub_tile))
    elif _num_tensorcores_per_chip() >= 2 and pl.cdiv(B, bt) < 2:
        # 2-TC chip (v7x) and the batch grid alone has a single step: split S to feed both
        # TensorCores, but only if the halved block still clears ~1 MiB.
        half = ((S // 2) // sub_tile) * sub_tile
        if half >= sub_tile and bt * half * L * itemsize >= (1 << 20):
            ts = int(half)

    grid = (pl.cdiv(B, bt), pl.cdiv(S, ts))

    out = pl.pallas_call(
        specaug_kernel,
        out_shape=jax.ShapeDtypeStruct((B, S, L), dtype),
        grid=grid,
        in_specs=[
            pl.BlockSpec((1, ts, L), lambda b, s: (0, s, 0)),    # shared keep mask
            pl.BlockSpec((bt, ts, L), lambda b, s: (b, s, 0)),   # feature rows
        ],
        out_specs=pl.BlockSpec((bt, ts, L), lambda b, s: (b, s, 0)),
        input_output_aliases={1: 0},   # feature operand aliases the output (needs donation)
        compiler_params=pltpu.CompilerParams(
            dimension_semantics=("parallel", "parallel"),
            vmem_limit_bytes=32 << 20),
    )(keep, x)

    out = out.reshape(B, TF_pad)
    if pad:
        out = out[:, :TF]
    return out.reshape(B, T, F)


# Donating feature_pwr lets XLA honor input_output_aliases without a defensive copy.
# Callers must not reuse feature_pwr after this call.
specaug = jax.jit(specaug_pallas, donate_argnums=(0,),
                  static_argnames=("block_target_bytes",))


def sample_axis_mask(key, mask_param, axis_len):
    """Replicates torchaudio.functional.mask_along_axis sampling. Returns [start, end)."""
    k1, k2 = jax.random.split(key)
    value = jax.random.uniform(k1, (), jnp.float32) * mask_param
    min_value = jax.random.uniform(k2, (), jnp.float32) * (axis_len - value)
    start = min_value.astype(jnp.int32)
    end = start + value.astype(jnp.int32)
    return jnp.stack([start, end])


def reference_specaug(feature_pwr, freq_masks, time_masks):
    x = feature_pwr
    B, T, F = x.shape
    t_idx = jnp.arange(T)[None, :, None]
    f_idx = jnp.arange(F)[None, None, :]
    for m in range(freq_masks.shape[0]):
        band = (f_idx >= freq_masks[m, 0]) & (f_idx < freq_masks[m, 1])
        x = jnp.where(band, 0.0, x)
    for m in range(time_masks.shape[0]):
        band = (t_idx >= time_masks[m, 0]) & (t_idx < time_masks[m, 1])
        x = jnp.where(band, 0.0, x)
    return x


if __name__ == "__main__":
    key = jax.random.PRNGKey(0)
    k_feat, k_masks = jax.random.split(key)

    B, T, F = 2, 64, 80
    feature_pwr = jax.random.normal(k_feat, (B, T, F), dtype=jnp.float32) ** 2
    expect_shape, expect_dtype = feature_pwr.shape, feature_pwr.dtype

    # Sample mask bands on host (stands in for `random` / torch.rand in forward).
    mask_keys = jax.random.split(k_masks, NUM_FREQ_MASKS + NUM_TIME_MASKS)
    freq_masks = jnp.stack(
        [sample_axis_mask(mask_keys[i], FREQ_MASK_PARAM, F)
         for i in range(NUM_FREQ_MASKS)]).astype(jnp.int32)
    time_masks = jnp.stack(
        [sample_axis_mask(mask_keys[NUM_FREQ_MASKS + i], TIME_MASK_PARAM, T)
         for i in range(NUM_TIME_MASKS)]).astype(jnp.int32)

    # Reference is computed BEFORE the kernel call (feature_pwr is donated to the kernel).
    ref = reference_specaug(feature_pwr, freq_masks, time_masks)
    ref = jax.block_until_ready(ref)

    out = specaug(feature_pwr, freq_masks, time_masks)
    out = jax.block_until_ready(out)

    assert out.shape == expect_shape and out.dtype == expect_dtype
    assert jnp.allclose(out, ref), "Pallas SpecAug mismatch vs reference"

    print("KERNEL_OK")
</pallas_src>

<mosaic_0001>
module attributes {stable_mosaic.version = 11 : i64} {
  func.func @specaug_kernel(%arg0: i32, %arg1: i32, %arg2: memref<1x40x128xf32, #tpu.memory_space<vmem>>, %arg3: memref<2x40x128xf32, #tpu.memory_space<vmem>>, %arg4: memref<2x40x128xf32, #tpu.memory_space<vmem>>) attributes {dimension_semantics = [#tpu.dimension_semantics<parallel>, #tpu.dimension_semantics<parallel>], iteration_bounds = array<i64: 1, 1>, scalar_prefetch = 0 : i64, scratch_operands = 0 : i64, tpu.core_type = #tpu.core_type<tc>, window_params = [{transform_indices = @transform_0, window_bounds = array<i64: 1, 40, 128>}, {transform_indices = @transform_1, window_bounds = array<i64: 2, 40, 128>}, {transform_indices = @transform_2, window_bounds = array<i64: 2, 40, 128>}]} {
    %c0 = arith.constant 0 : index
    %c0_0 = arith.constant 0 : index
    %c0_1 = arith.constant 0 : index
    %0 = vector.load %arg3[%c0, %c0_0, %c0_1] : memref<2x40x128xf32, #tpu.memory_space<vmem>>, vector<2x40x128xf32>
    %c0_2 = arith.constant 0 : index
    %c0_3 = arith.constant 0 : index
    %c0_4 = arith.constant 0 : index
    %1 = vector.load %arg2[%c0_2, %c0_3, %c0_4] : memref<1x40x128xf32, #tpu.memory_space<vmem>>, vector<1x40x128xf32>
    %2 = vector.broadcast %1 : vector<1x40x128xf32> to vector<2x40x128xf32>
    %3 = arith.mulf %0, %2 : vector<2x40x128xf32>
    %c0_5 = arith.constant 0 : index
    %c0_6 = arith.constant 0 : index
    %c0_7 = arith.constant 0 : index
    %4 = vector.load %arg4[%c0_5, %c0_6, %c0_7] : memref<2x40x128xf32, #tpu.memory_space<vmem>>, vector<2x40x128xf32>
    tpu.vector_store %arg4[%c0_5, %c0_6, %c0_7], %3 {strides = array<i32>} : memref<2x40x128xf32, #tpu.memory_space<vmem>>, vector<2x40x128xf32>,
    return
  }
  func.func @transform_0(%arg0: i32, %arg1: i32) -> (i32, i32, i32) {
    %c0_i32 = arith.constant 0 : i32
    %c0_i32_0 = arith.constant 0 : i32
    %c0_i32_1 = arith.constant 0 : i32
    return %c0_i32, %arg1, %c0_i32_0 : i32, i32, i32
  }
  func.func @transform_1(%arg0: i32, %arg1: i32) -> (i32, i32, i32) {
    %c0_i32 = arith.constant 0 : i32
    %c0_i32_0 = arith.constant 0 : i32
    return %arg0, %arg1, %c0_i32 : i32, i32, i32
  }
  func.func @transform_2(%arg0: i32, %arg1: i32) -> (i32, i32, i32) {
    %c0_i32 = arith.constant 0 : i32
    %c0_i32_0 = arith.constant 0 : i32
    return %arg0, %arg1, %c0_i32 : i32, i32, i32
  }
}

</mosaic_0001>

<llo_original>
// kernel: specaug_pallas.1
$region0: #{specaug_pallas.1}
  #allocation0 [shape = 'u32[]', space=smem, size = 0x4, offset = 0x4, fixed_abs, tag = 'smem constant byte address 0x4 - core index']
  #allocation1 [shape = 'u32[72,128]{1,0:T(1,128)}', space=vmem, size = 0x9000, scoped, tag = 'internal scratch']
  %s0 = inlined_call_operand.vmem [shape: f32[1,40,128], index: 0, kind: input, shape index: {}]
  %s1 = inlined_call_operand.vmem [shape: f32[2,40,128], index: 1, kind: input, shape index: {}, may-alias: {1,2}]
  %s2 = inlined_call_operand.vmem [shape: f32[2,40,128], index: 2, kind: output, shape index: {}, may-alias: {1,2}]
  %s3 = sld [smem:[#allocation0]]
  $region18: #{specaug_pallas.1} parent=0
    _
  %s5 = ssub.s32 1, %s3
  %s6 = scalar_select 0, %s5, %s3
  // Predicated region
  $region2: #{specaug_pallas.1} parent=0 // pred_check
    _
  $region3: #{specaug_pallas.1} parent=0 // pred_check_branch
    %8 = sbr.rel (0) target = $region5
  $region4: #{specaug_pallas.1} parent=0 // pred_region
    _
  $region5: #{specaug_pallas.1} parent=0 // pred_fallthru
    _
  // Predicated region
  $region6: #{specaug_pallas.1} parent=0 // pred_check
    _
  $region7: #{specaug_pallas.1} parent=0 // pred_check_branch
    %10 = sbr.rel (0) target = $region9
  $region8: #{specaug_pallas.1} parent=0 // pred_region
    _
  $region9: #{specaug_pallas.1} parent=0 // pred_fallthru
    _
  %v11 = vld [vmem:[%s1] sm:$0xff]
  %v12 = vld [vmem:[%s1 + $0x8] sm:$0xff]
  %v13 = vld [vmem:[%s1 + $0x10] sm:$0xff]
  %v14 = vld [vmem:[%s1 + $0x18] sm:$0xff]
  %v15 = vld [vmem:[%s1 + $0x20] sm:$0xff]
  %v16 = vld [vmem:[%s1 + $0x28] sm:$0xff]
  %v17 = vld [vmem:[%s1 + $0x30] sm:$0xff]
  %v18 = vld [vmem:[%s1 + $0x38] sm:$0xff]
  %v19 = vld [vmem:[%s1 + $0x40] sm:$0xff]
  %v20 = vld [vmem:[%s1 + $0x48] sm:$0xff]
  %v21 = vld [vmem:[%s0] sm:$0xff]
  %v22 = vld [vmem:[%s0 + $0x8] sm:$0xff]
  %v23 = vld [vmem:[%s0 + $0x10] sm:$0xff]
  %v24 = vld [vmem:[%s0 + $0x18] sm:$0xff]
  %v25 = vld [vmem:[%s0 + $0x20] sm:$0xff]
  %v26 = vmul.f32 %v11, %v21
  %v27 = vmul.f32 %v12, %v22
  %v28 = vmul.f32 %v13, %v23
  %v29 = vmul.f32 %v14, %v24
  %v30 = vmul.f32 %v15, %v25
  %v31 = vmul.f32 %v16, %v21
  %v32 = vmul.f32 %v17, %v22
  %v33 = vmul.f32 %v18, %v23
  %v34 = vmul.f32 %v19, %v24
  %v35 = vmul.f32 %v20, %v25
  %36 = vst [vmem:[%s2] sm:$0xff] %v26
  %37 = vst [vmem:[%s2 + $0x8] sm:$0xff] %v27
  %38 = vst [vmem:[%s2 + $0x10] sm:$0xff] %v28
  %39 = vst [vmem:[%s2 + $0x18] sm:$0xff] %v29
  %40 = vst [vmem:[%s2 + $0x20] sm:$0xff] %v30
  %41 = vst [vmem:[%s2 + $0x28] sm:$0xff] %v31
  %42 = vst [vmem:[%s2 + $0x30] sm:$0xff] %v32
  %43 = vst [vmem:[%s2 + $0x38] sm:$0xff] %v33
  %44 = vst [vmem:[%s2 + $0x40] sm:$0xff] %v34
  %45 = vst [vmem:[%s2 + $0x48] sm:$0xff] %v35
  // Predicated region
  $region10: #{specaug_pallas.1} parent=0 // pred_check
    _
  $region11: #{specaug_pallas.1} parent=0 // pred_check_branch
    %47 = sbr.rel (0) target = $region13
  $region12: #{specaug_pallas.1} parent=0 // pred_region
    _
  $region13: #{specaug_pallas.1} parent=0 // pred_fallthru
    _
  // Predicated region
  $region14: #{specaug_pallas.1} parent=0 // pred_check
    _
  $region15: #{specaug_pallas.1} parent=0 // pred_check_branch
    %49 = sbr.rel (0) target = $region17
  $region16: #{specaug_pallas.1} parent=0 // pred_region
    _
  $region17: #{specaug_pallas.1} parent=0 // pred_fallthru
    _

</llo_original>
